<compile_context>
chip_gen: v6e
topology: v6e:2x2x1
jax: 0.10.0
libtpu: 0.0.40
codegen_flags: <defaults>
</compile_context>

<pallas_src>
import functools

import jax
import jax.numpy as jnp
from jax.experimental import pallas as pl
from jax.experimental.pallas import tpu as pltpu

LANE = 128
SUBLANE = 8  # x/out stay f32 in HBM -> 8-row sublane alignment for batch tiles


def _round_up(x, m):
    return ((x + m - 1) // m) * m


def deep_q_kernel(x_ref, w1_ref, b1_ref, w2_ref, b2_ref, w3_ref, b3_ref,
                  out_ref, *, compute_dtype):
    # x_ref: (tile_b, d_in) f32; wN: compute_dtype; bN: f32; out: (tile_b, n_actions) f32.
    x = x_ref[...].astype(compute_dtype)

    # fc1 + ReLU: MXU matmul with f32 accumulation, bias/ReLU in f32 on the VPU.
    h1 = jnp.dot(x, w1_ref[...], preferred_element_type=jnp.float32)
    h1 = jnp.maximum(h1 + b1_ref[...], 0.0)
    # drop1: identity (eval/inference mode)

    # fc2 + ReLU
    h2 = jnp.dot(h1.astype(compute_dtype), w2_ref[...],
                 preferred_element_type=jnp.float32)
    h2 = jnp.maximum(h2 + b2_ref[...], 0.0)
    # drop2: identity (eval/inference mode)

    # fc3 (no activation); narrow-N output stored unpadded (masked store beats
    # a 32x-inflated lane-padded writeback at n_actions=4).
    a = jnp.dot(h2.astype(compute_dtype), w3_ref[...],
                preferred_element_type=jnp.float32)
    out_ref[...] = (a + b3_ref[...]).astype(out_ref.dtype)


def prepare_params(w1, b1, w2, b2, w3, b3, *, compute_dtype=jnp.bfloat16):
    """One-time parameter preparation (hoisted out of the forward pass).

    Hidden dims are zero-padded to 128 lanes so the intermediate matmuls are
    lane-dense; d_in and n_actions are left unpadded. Weights are cast to the
    MXU compute dtype once; biases stay f32 (added after f32 accumulation).
    Zero padding is exact math (zero cols -> ReLU(0)=0 -> contributes 0).
    """
    d_in, h1_dim = w1.shape
    h2_dim = w2.shape[1]
    n_actions = w3.shape[1]
    h1_p = _round_up(h1_dim, LANE)
    h2_p = _round_up(h2_dim, LANE)

    w1p = jnp.pad(w1, ((0, 0), (0, h1_p - h1_dim))).astype(compute_dtype)
    b1p = jnp.pad(b1, ((0, 0), (0, h1_p - h1_dim)))                 # f32
    w2p = jnp.pad(w2, ((0, h1_p - h1_dim), (0, h2_p - h2_dim))).astype(compute_dtype)
    b2p = jnp.pad(b2, ((0, 0), (0, h2_p - h2_dim)))                 # f32
    w3p = jnp.pad(w3, ((0, h2_p - h2_dim), (0, 0))).astype(compute_dtype)
    b3p = b3                                                        # f32, unpadded

    return {
        "weights": (w1p, b1p, w2p, b2p, w3p, b3p),
        "dims": (d_in, h1_dim, h2_dim, n_actions),
        "compute_dtype": compute_dtype,
    }


def deep_q_forward(x, params, *, tile_b=1024):
    """x: (B, d_in) f32; params: output of prepare_params. Returns (B, n_actions) f32."""
    w1p, b1p, w2p, b2p, w3p, b3p = params["weights"]
    d_in, h1_dim, h2_dim, n_actions = params["dims"]
    compute_dtype = params["compute_dtype"]

    B = x.shape[0]
    assert x.shape[1] == d_in

    # Big tiles (few ~0.35us grid steps) but cap at ceil(B/2) so the "parallel"
    # batch axis gives both v7x TensorCores work (no-op on v5e/v6e, 1 TC).
    tile_b = max(SUBLANE, min(tile_b, _round_up(pl.cdiv(B, 2), SUBLANE)))
    b_p = _round_up(B, tile_b)

    xp = x if b_p == B else jnp.pad(x, ((0, b_p - B), (0, 0)))
    grid = (b_p // tile_b,)

    # x/out are the only streamed arrays; last block dim equals the full array
    # dim (legal), so no lane padding is manufactured for the narrow dims.
    x_spec = pl.BlockSpec((tile_b, d_in), lambda i: (i, 0))
    out_spec = pl.BlockSpec((tile_b, n_actions), lambda i: (i, 0))

    def resident(arr):
        # Constant block index -> weights/biases stay VMEM-resident across steps.
        # TODO(synk): pipeline_mode=pl.Buffered(1) would halve the resident weight
        # VMEM footprint for wide hidden layers; negligible at these widths.
        return pl.BlockSpec(arr.shape, lambda i: (0, 0))

    # Advisory cost estimate from the true (unpadded) dims.
    flops = 2 * B * (d_in * h1_dim + h1_dim * h2_dim + h2_dim * n_actions)
    bytes_accessed = int(x.size) * x.dtype.itemsize
    bytes_accessed += sum(int(a.size) * a.dtype.itemsize
                          for a in (w1p, b1p, w2p, b2p, w3p, b3p))
    bytes_accessed += B * n_actions * 4  # f32 output

    out_p = pl.pallas_call(
        functools.partial(deep_q_kernel, compute_dtype=compute_dtype),
        out_shape=jax.ShapeDtypeStruct((b_p, n_actions), jnp.float32),
        grid=grid,
        in_specs=[x_spec,
                  resident(w1p), resident(b1p),
                  resident(w2p), resident(b2p),
                  resident(w3p), resident(b3p)],
        out_specs=out_spec,
        compiler_params=pltpu.CompilerParams(
            dimension_semantics=("parallel",)),
        cost_estimate=pl.CostEstimate(
            flops=flops, transcendentals=0, bytes_accessed=bytes_accessed),
    )(xp, w1p, b1p, w2p, b2p, w3p, b3p)

    return out_p if b_p == B else out_p[:B]


def init_linear_params(key, in_dim, out_dim):
    """Deterministic init matching nn.Linear's U(-1/sqrt(in), 1/sqrt(in))."""
    k_w, k_b = jax.random.split(key)
    bound = 1.0 / jnp.sqrt(jnp.float32(in_dim))
    # stored as (in_dim, out_dim) == torch_weight.T
    w = jax.random.uniform(k_w, (in_dim, out_dim), jnp.float32, -bound, bound)
    b = jax.random.uniform(k_b, (1, out_dim), jnp.float32, -bound, bound)
    return w, b


if __name__ == "__main__":
    # Small shapes consistent with DeepQNetwork(input_dims=(16,), fc1_dims=32,
    # fc2_dims=32, n_actions=4, lr=...)
    batch = 8
    input_dims = 16
    fc1_dims = 32
    fc2_dims = 32
    n_actions = 4

    key = jax.random.PRNGKey(0)
    k_x, k1, k2, k3 = jax.random.split(key, 4)

    x = jax.random.normal(k_x, (batch, input_dims), jnp.float32)
    w1, b1 = init_linear_params(k1, input_dims, fc1_dims)
    w2, b2 = init_linear_params(k2, fc1_dims, fc2_dims)
    w3, b3 = init_linear_params(k3, fc2_dims, n_actions)

    # Pure-JAX reference of the same forward math (dropout = identity in eval).
    h1 = jnp.maximum(x @ w1 + b1, 0.0)
    h2 = jnp.maximum(h1 @ w2 + b2, 0.0)
    ref = h2 @ w3 + b3

    # Default bf16 MXU path (f32 accumulation) — loosened tolerance.
    params_bf16 = prepare_params(w1, b1, w2, b2, w3, b3)
    actions_bf16 = jax.block_until_ready(deep_q_forward(x, params_bf16))
    assert actions_bf16.shape == (batch, n_actions)
    assert jnp.allclose(actions_bf16, ref, atol=5e-2, rtol=5e-2)

    # f32 path — exact-ish match.
    params_f32 = prepare_params(w1, b1, w2, b2, w3, b3,
                                compute_dtype=jnp.float32)
    actions_f32 = jax.block_until_ready(deep_q_forward(x, params_f32))
    assert actions_f32.shape == (batch, n_actions)
    assert jnp.allclose(actions_f32, ref, atol=1e-5, rtol=1e-5)

    print("KERNEL_OK")
</pallas_src>

<mosaic_0001>
module attributes {stable_mosaic.version = 11 : i64} {
  func.func @deep_q_kernel(%arg0: i32, %arg1: memref<8x16xf32, #tpu.memory_space<vmem>>, %arg2: memref<16x128xbf16, #tpu.memory_space<vmem>>, %arg3: memref<1x128xf32, #tpu.memory_space<vmem>>, %arg4: memref<128x128xbf16, #tpu.memory_space<vmem>>, %arg5: memref<1x128xf32, #tpu.memory_space<vmem>>, %arg6: memref<128x4xbf16, #tpu.memory_space<vmem>>, %arg7: memref<1x4xf32, #tpu.memory_space<vmem>>, %arg8: memref<8x4xf32, #tpu.memory_space<vmem>>) attributes {dimension_semantics = [#tpu.dimension_semantics<parallel>], iteration_bounds = array<i64: 1>, scalar_prefetch = 0 : i64, scratch_operands = 0 : i64, tpu.core_type = #tpu.core_type<tc>, window_params = [{transform_indices = @transform_0, window_bounds = array<i64: 8, 16>}, {pipeline_mode = #tpu.pipeline_mode<synchronous>, transform_indices = @transform_1, window_bounds = array<i64: 16, 128>}, {pipeline_mode = #tpu.pipeline_mode<synchronous>, transform_indices = @transform_2, window_bounds = array<i64: 1, 128>}, {pipeline_mode = #tpu.pipeline_mode<synchronous>, transform_indices = @transform_3, window_bounds = array<i64: 128, 128>}, {pipeline_mode = #tpu.pipeline_mode<synchronous>, transform_indices = @transform_4, window_bounds = array<i64: 1, 128>}, {pipeline_mode = #tpu.pipeline_mode<synchronous>, transform_indices = @transform_5, window_bounds = array<i64: 128, 4>}, {pipeline_mode = #tpu.pipeline_mode<synchronous>, transform_indices = @transform_6, window_bounds = array<i64: 1, 4>}, {transform_indices = @transform_7, window_bounds = array<i64: 8, 4>}]} {
    %c0 = arith.constant 0 : index
    %c0_0 = arith.constant 0 : index
    %0 = vector.load %arg1[%c0, %c0_0] : memref<8x16xf32, #tpu.memory_space<vmem>>, vector<8x16xf32>
    %1 = arith.truncf %0 : vector<8x16xf32> to vector<8x16xbf16>
    %c0_1 = arith.constant 0 : index
    %c0_2 = arith.constant 0 : index
    %2 = vector.load %arg2[%c0_1, %c0_2] : memref<16x128xbf16, #tpu.memory_space<vmem>>, vector<16x128xbf16>
    %cst = arith.constant dense<0.000000e+00> : vector<8x128xf32>
    %3 = tpu.matmul %1, %2, %cst {dimension_numbers = #tpu.dot_dimension_numbers<[1], [0], [0], [1], [0, 0, 1, 1], [], []>} : vector<8x16xbf16>, vector<16x128xbf16>, vector<8x128xf32> -> vector<8x128xf32>
    %c0_3 = arith.constant 0 : index
    %c0_4 = arith.constant 0 : index
    %4 = vector.load %arg3[%c0_3, %c0_4] : memref<1x128xf32, #tpu.memory_space<vmem>>, vector<1x128xf32>
    %5 = vector.broadcast %4 : vector<1x128xf32> to vector<8x128xf32>
    %6 = arith.addf %3, %5 : vector<8x128xf32>
    %cst_5 = arith.constant 0.000000e+00 : f32
    %7 = vector.broadcast %cst_5 : f32 to vector<8x128xf32>
    %8 = arith.maximumf %6, %7 : vector<8x128xf32>
    %9 = arith.truncf %8 : vector<8x128xf32> to vector<8x128xbf16>
    %c0_6 = arith.constant 0 : index
    %c0_7 = arith.constant 0 : index
    %10 = vector.load %arg4[%c0_6, %c0_7] : memref<128x128xbf16, #tpu.memory_space<vmem>>, vector<128x128xbf16>
    %cst_8 = arith.constant dense<0.000000e+00> : vector<8x128xf32>
    %11 = tpu.matmul %9, %10, %cst_8 {dimension_numbers = #tpu.dot_dimension_numbers<[1], [0], [0], [1], [0, 0, 1, 1], [], []>} : vector<8x128xbf16>, vector<128x128xbf16>, vector<8x128xf32> -> vector<8x128xf32>
    %c0_9 = arith.constant 0 : index
    %c0_10 = arith.constant 0 : index
    %12 = vector.load %arg5[%c0_9, %c0_10] : memref<1x128xf32, #tpu.memory_space<vmem>>, vector<1x128xf32>
    %13 = vector.broadcast %12 : vector<1x128xf32> to vector<8x128xf32>
    %14 = arith.addf %11, %13 : vector<8x128xf32>
    %cst_11 = arith.constant 0.000000e+00 : f32
    %15 = vector.broadcast %cst_11 : f32 to vector<8x128xf32>
    %16 = arith.maximumf %14, %15 : vector<8x128xf32>
    %17 = arith.truncf %16 : vector<8x128xf32> to vector<8x128xbf16>
    %c0_12 = arith.constant 0 : index
    %c0_13 = arith.constant 0 : index
    %18 = vector.load %arg6[%c0_12, %c0_13] : memref<128x4xbf16, #tpu.memory_space<vmem>>, vector<128x4xbf16>
    %cst_14 = arith.constant dense<0.000000e+00> : vector<8x4xf32>
    %19 = tpu.matmul %17, %18, %cst_14 {dimension_numbers = #tpu.dot_dimension_numbers<[1], [0], [0], [1], [0, 0, 1, 1], [], []>} : vector<8x128xbf16>, vector<128x4xbf16>, vector<8x4xf32> -> vector<8x4xf32>
    %c0_15 = arith.constant 0 : index
    %c0_16 = arith.constant 0 : index
    %20 = vector.load %arg7[%c0_15, %c0_16] : memref<1x4xf32, #tpu.memory_space<vmem>>, vector<1x4xf32>
    %21 = vector.broadcast %20 : vector<1x4xf32> to vector<8x4xf32>
    %22 = arith.addf %19, %21 : vector<8x4xf32>
    %c0_17 = arith.constant 0 : index
    %c0_18 = arith.constant 0 : index
    %23 = vector.load %arg8[%c0_17, %c0_18] : memref<8x4xf32, #tpu.memory_space<vmem>>, vector<8x4xf32>
    tpu.vector_store %arg8[%c0_17, %c0_18], %22 {strides = array<i32>} : memref<8x4xf32, #tpu.memory_space<vmem>>, vector<8x4xf32>,
    return
  }
  func.func @transform_0(%arg0: i32) -> (i32, i32) {
    %c0_i32 = arith.constant 0 : i32
    %c0_i32_0 = arith.constant 0 : i32
    return %arg0, %c0_i32 : i32, i32
  }
  func.func @transform_1(%arg0: i32) -> (i32, i32) {
    %c0_i32 = arith.constant 0 : i32
    %c0_i32_0 = arith.constant 0 : i32
    %c0_i32_1 = arith.constant 0 : i32
    return %c0_i32, %c0_i32_0 : i32, i32
  }
  func.func @transform_2(%arg0: i32) -> (i32, i32) {
    %c0_i32 = arith.constant 0 : i32
    %c0_i32_0 = arith.constant 0 : i32
    %c0_i32_1 = arith.constant 0 : i32
    return %c0_i32, %c0_i32_0 : i32, i32
  }
  func.func @transform_3(%arg0: i32) -> (i32, i32) {
    %c0_i32 = arith.constant 0 : i32
    %c0_i32_0 = arith.constant 0 : i32
    %c0_i32_1 = arith.constant 0 : i32
    return %c0_i32, %c0_i32_0 : i32, i32
  }
  func.func @transform_4(%arg0: i32) -> (i32, i32) {
    %c0_i32 = arith.constant 0 : i32
    %c0_i32_0 = arith.constant 0 : i32
    %c0_i32_1 = arith.constant 0 : i32
    return %c0_i32, %c0_i32_0 : i32, i32
  }
  func.func @transform_5(%arg0: i32) -> (i32, i32) {
    %c0_i32 = arith.constant 0 : i32
    %c0_i32_0 = arith.constant 0 : i32
    %c0_i32_1 = arith.constant 0 : i32
    return %c0_i32, %c0_i32_0 : i32, i32
  }
  func.func @transform_6(%arg0: i32) -> (i32, i32) {
    %c0_i32 = arith.constant 0 : i32
    %c0_i32_0 = arith.constant 0 : i32
    %c0_i32_1 = arith.constant 0 : i32
    return %c0_i32, %c0_i32_0 : i32, i32
  }
  func.func @transform_7(%arg0: i32) -> (i32, i32) {
    %c0_i32 = arith.constant 0 : i32
    %c0_i32_0 = arith.constant 0 : i32
    return %arg0, %c0_i32 : i32, i32
  }
}

</mosaic_0001>

<llo_original>
// kernel: tpu_custom_call.1
$region0: #{tpu_custom_call.1}
  #allocation0 [shape = 'u32[]', space=smem, size = 0x4, offset = 0x4, fixed_abs, tag = 'smem constant byte address 0x4 - core index']
  #allocation1 [shape = 'u32[144,128]{1,0:T(1,128)}', space=vmem, size = 0x12000, scoped, tag = 'internal scratch']
  %s0 = inlined_call_operand.hbm [shape: f32[8,16], index: 0, kind: input, shape index: {}]
  %s1 = inlined_call_operand.hbm [shape: bf16[16,128], index: 1, kind: input, shape index: {}]
  %s2 = inlined_call_operand.vmem [shape: f32[1,128], index: 2, kind: input, shape index: {}]
  %s3 = inlined_call_operand.vmem [shape: bf16[128,128], index: 3, kind: input, shape index: {}]
  %s4 = inlined_call_operand.vmem [shape: f32[1,128], index: 4, kind: input, shape index: {}]
  %s5 = inlined_call_operand.vmem [shape: bf16[128,4], index: 5, kind: input, shape index: {}]
  %s6 = inlined_call_operand.vmem [shape: f32[1,4], index: 6, kind: input, shape index: {}]
  %s7 = inlined_call_operand.vmem [shape: f32[8,4], index: 7, kind: output, shape index: {}]
  %s8 = sld [smem:[#allocation0]]
  $region46: #{tpu_custom_call.1} parent=0
    _
  %s10 = ssub.s32 1, %s8
  %s11 = scalar_select 0, %s10, %s8
  $region1: #{tpu_custom_call.1} parent=0
    #allocation2 [shape = 'u8[4096]{0}', space=vmem, size = 0x1000, scoped, tag = 'input window, operand 0, single buffered']
    #allocation3 [shape = 's32[1]{0}', space=sflag, size = 0x4, scoped, tag = 'scoped memory for tpu_custom_call.1']
    #allocation4 [shape = 'u8[4096]{0}', space=vmem, size = 0x1000, scoped, tag = 'input window, operand 1, single buffered']
    #allocation5 [shape = 's32[1]{0}', space=sflag, size = 0x4, scoped, tag = 'scoped memory for tpu_custom_call.1']
    %12 = vsyncpa [#allocation3], 0
    %13 = vsyncpa [#allocation5], 0
    // Predicated region
    $region2: #{tpu_custom_call.1} parent=1 // pred_check
      _
    $region3: #{tpu_custom_call.1} parent=1 // pred_check_branch
      %15 = sbr.rel (0) target = $region5
    $region4: #{tpu_custom_call.1} parent=1 // pred_region
      %s17 = ssub.s32 128, 128
      %18 = vsyncadd [#allocation3], %s17
      %s20 = sshll.u32 [#allocation2], 4
      %s21 = int_to_ptr.vmem [resolvable:$true] %s20
      %23 = dma.hbm_to_vmem [thread:$0]  %s0, 128, %s21, [#allocation3]
    $region5: #{tpu_custom_call.1} parent=1 // pred_fallthru
      _
    // Predicated region
    $region6: #{tpu_custom_call.1} parent=1 // pred_check
      _
    $region7: #{tpu_custom_call.1} parent=1 // pred_check_branch
      %25 = sbr.rel (0) target = $region9
    $region8: #{tpu_custom_call.1} parent=1 // pred_region
      %s27 = ssub.s32 128, 128
      %28 = vsyncadd [#allocation5], %s27
      %s29 = sshll.u32 [#allocation4], 4
      %s30 = int_to_ptr.vmem [resolvable:$true] %s29
      %35 = dma.hbm_to_vmem [thread:$0]  %s1, 128, %s30, [#allocation5], 64, 64, 4
    $region9: #{tpu_custom_call.1} parent=1 // pred_fallthru
      _
    // Predicated region
    $region10: #{tpu_custom_call.1} parent=1 // pred_check
      _
    $region11: #{tpu_custom_call.1} parent=1 // pred_check_branch
      %37 = sbr.rel (0) target = $region13
    $region12: #{tpu_custom_call.1} parent=1 // pred_region
      _
    $region13: #{tpu_custom_call.1} parent=1 // pred_fallthru
      _
    // Predicated region
    $region14: #{tpu_custom_call.1} parent=1 // pred_check
      _
    $region15: #{tpu_custom_call.1} parent=1 // pred_check_branch
      %39 = sbr.rel (0) target = $region17
    $region16: #{tpu_custom_call.1} parent=1 // pred_region
      _
    $region17: #{tpu_custom_call.1} parent=1 // pred_fallthru
      _
    // Predicated region
    $region18: #{tpu_custom_call.1} parent=1 // pred_check
      _
    $region19: #{tpu_custom_call.1} parent=1 // pred_check_branch
      %41 = sbr.rel (0) target = $region21
    $region20: #{tpu_custom_call.1} parent=1 // pred_region
      _
    $region21: #{tpu_custom_call.1} parent=1 // pred_fallthru
      _
    // Predicated region
    $region22: #{tpu_custom_call.1} parent=1 // pred_check
      _
    $region23: #{tpu_custom_call.1} parent=1 // pred_check_branch
      %43 = sbr.rel (0) target = $region25
    $region24: #{tpu_custom_call.1} parent=1 // pred_region
      _
    $region25: #{tpu_custom_call.1} parent=1 // pred_fallthru
      _
    // Predicated region
    $region26: #{tpu_custom_call.1} parent=1 // pred_check
      _
    $region27: #{tpu_custom_call.1} parent=1 // pred_check_branch
      %45 = sbr.rel (0) target = $region29
    $region28: #{tpu_custom_call.1} parent=1 // pred_region
      _
    $region29: #{tpu_custom_call.1} parent=1 // pred_fallthru
      _
    // Predicated region
    $region30: #{tpu_custom_call.1} parent=1 // pred_check
      _
    $region31: #{tpu_custom_call.1} parent=1 // pred_check_branch
      %47 = sbr.rel (0) target = $region33
    $region32: #{tpu_custom_call.1} parent=1 // pred_region
      %48 = dma.done [#allocation3], 128
    $region33: #{tpu_custom_call.1} parent=1 // pred_fallthru
      _
    // Predicated region
    $region34: #{tpu_custom_call.1} parent=1 // pred_check
      _
    $region35: #{tpu_custom_call.1} parent=1 // pred_check_branch
      %50 = sbr.rel (0) target = $region37
    $region36: #{tpu_custom_call.1} parent=1 // pred_region
      %51 = dma.done [#allocation5], 128
    $region37: #{tpu_custom_call.1} parent=1 // pred_fallthru
      _
    %v53 = vld [vmem:[#allocation2] sm:$0xff]
    %v54 = vpack.c.bf16 %v53, %v53
    %v55 = vld [vmem:[#allocation4] sm:$0xf]
    %v56 = vld [vmem:[#allocation4 + $0x4] sm:$0xf]
    %v57 = vld [vmem:[%s2] sm:$0x1]
    %v59 = vlaneseq
    %v60 = vshrl.u32 %v59, 7
    %v61 = vsub.s32 0, %v60
    %v62 = vrot.slane %v57, %v61
    %v66 = vunpack.c.l.b16 %v55
    %v67 = vunpack.c.l.b16 %v56
    %v68 = vpack.c.b16 %v67, %v66
    %vm70 = vcmask 130048
    %v72 = vsel %vm70, %v54, 0
    %74 = vmatprep.subr.bf16.mxu0 0
    %75 = vmatpush1.bf16.msra.mxu0 0
    %76 = vmatprep.subr.bf16.mxu0 0
    %77 = vmatpush1.bf16.msra.mxu0 0
    %78 = vmatprep.subr.bf16.mxu0 0
    %79 = vmatpush1.bf16.msra.mxu0 0
    %80 = vmatprep.subr.bf16.mxu0 0
    %81 = vmatpush1.bf16.msra.mxu0 0
    %82 = vmatprep.subr.bf16.mxu0 0
    %83 = vmatpush1.bf16.msra.mxu0 0
    %84 = vmatprep.subr.bf16.mxu0 0
    %85 = vmatpush1.bf16.msra.mxu0 0
    %86 = vmatprep.subr.bf16.mxu0 0
    %87 = vmatpush1.bf16.msra.mxu0 0
    %88 = vmatprep.subr.bf16.mxu0 0
    %89 = vmatpush1.bf16.msra.mxu0 %v68
    %90 = vmatprep.subr.bf16.mxu0 0
    %91 = vmatpush2.bf16.msra.mxu0 0
    %92 = vmatprep.subr.bf16.mxu0 0
    %93 = vmatpush2.bf16.msra.mxu0 0
    %94 = vmatprep.subr.bf16.mxu0 0
    %95 = vmatpush2.bf16.msra.mxu0 0
    %96 = vmatprep.subr.bf16.mxu0 0
    %97 = vmatpush2.bf16.msra.mxu0 0
    %98 = vmatprep.subr.bf16.mxu0 0
    %99 = vmatpush2.bf16.msra.mxu0 0
    %100 = vmatprep.subr.bf16.mxu0 0
    %101 = vmatpush2.bf16.msra.mxu0 0
    %102 = vmatprep.subr.bf16.mxu0 0
    %103 = vmatpush2.bf16.msra.mxu0 0
    %104 = vmatprep.subr.bf16.mxu0 0
    %105 = vmatpush2.bf16.msra.mxu0 0
    %106 = vmatprep.mubr.bf16.mxu0 0
    %107 = vmatmul.mubr.bf16.gmra.mxu0 %v72
    %v108 = vpop.f32.mrf.mxu0
    %v109 = vadd.f32 %v62, %v108
    %v110 = vpop.f32.mrf.mxu0
    %v111 = vpop.f32.mrf.mxu0
    %v112 = vpop.f32.mrf.mxu0
    %113 = vdwg.mxu0
    %v114 = vmax.f32 %v109, 0.0
    %v115 = vpack.c.bf16 %v114, %v114
    %v116 = vld [vmem:[%s3] sm:$0xf]
    %v117 = vld [vmem:[%s3 + $0x4] sm:$0xf]
    %v118 = vld [vmem:[%s3 + $0x8] sm:$0xf]
    %v119 = vld [vmem:[%s3 + $0xc] sm:$0xf]
    %v120 = vld [vmem:[%s3 + $0x10] sm:$0xf]
    %v121 = vld [vmem:[%s3 + $0x14] sm:$0xf]
    %v122 = vld [vmem:[%s3 + $0x18] sm:$0xf]
    %v123 = vld [vmem:[%s3 + $0x1c] sm:$0xf]
    %v124 = vld [vmem:[%s3 + $0x20] sm:$0xf]
    %v125 = vld [vmem:[%s3 + $0x24] sm:$0xf]
    %v126 = vld [vmem:[%s3 + $0x28] sm:$0xf]
    %v127 = vld [vmem:[%s3 + $0x2c] sm:$0xf]
    %v128 = vld [vmem:[%s3 + $0x30] sm:$0xf]
    %v129 = vld [vmem:[%s3 + $0x34] sm:$0xf]
    %v130 = vld [vmem:[%s3 + $0x38] sm:$0xf]
    %v131 = vld [vmem:[%s3 + $0x3c] sm:$0xf]
    %v132 = vld [vmem:[%s4] sm:$0x1]
    %v134 = vlaneseq
    %v135 = vshrl.u32 %v134, 7
    %v136 = vsub.s32 0, %v135
    %v137 = vrot.slane %v132, %v136
    %v155 = vunpack.c.l.b16 %v116
    %v156 = vunpack.c.l.b16 %v117
    %v157 = vunpack.c.l.b16 %v118
    %v158 = vunpack.c.l.b16 %v119
    %v159 = vunpack.c.l.b16 %v120
    %v160 = vunpack.c.l.b16 %v121
    %v161 = vunpack.c.l.b16 %v122
    %v162 = vunpack.c.l.b16 %v123
    %v163 = vunpack.c.l.b16 %v124
    %v164 = vunpack.c.l.b16 %v125
    %v165 = vunpack.c.l.b16 %v126
    %v166 = vunpack.c.l.b16 %v127
    %v167 = vunpack.c.l.b16 %v128
    %v168 = vunpack.c.l.b16 %v129
    %v169 = vunpack.c.l.b16 %v130
    %v170 = vunpack.c.l.b16 %v131
    %v171 = vpack.c.b16 %v156, %v155
    %v172 = vpack.c.b16 %v158, %v157
    %v173 = vpack.c.b16 %v160, %v159
    %v174 = vpack.c.b16 %v162, %v161
    %v175 = vpack.c.b16 %v164, %v163
    %v176 = vpack.c.b16 %v166, %v165
    %v177 = vpack.c.b16 %v168, %v167
    %v178 = vpack.c.b16 %v170, %v169
    %187 = vmatprep.subr.bf16.mxu0 0
    %188 = vmatpush1.bf16.msra.mxu0 %v178
    %189 = vmatprep.subr.bf16.mxu0 0
    %190 = vmatpush1.bf16.msra.mxu0 %v177
    %191 = vmatprep.subr.bf16.mxu0 0
    %192 = vmatpush1.bf16.msra.mxu0 %v176
    %193 = vmatprep.subr.bf16.mxu0 0
    %194 = vmatpush1.bf16.msra.mxu0 %v175
    %195 = vmatprep.subr.bf16.mxu0 0
    %196 = vmatpush1.bf16.msra.mxu0 %v174
    %197 = vmatprep.subr.bf16.mxu0 0
    %198 = vmatpush1.bf16.msra.mxu0 %v173
    %199 = vmatprep.subr.bf16.mxu0 0
    %200 = vmatpush1.bf16.msra.mxu0 %v172
    %201 = vmatprep.subr.bf16.mxu0 0
    %202 = vmatpush1.bf16.msra.mxu0 %v171
    %203 = vmatprep.subr.bf16.mxu0 0
    %204 = vmatpush2.bf16.msra.mxu0 0
    %205 = vmatprep.subr.bf16.mxu0 0
    %206 = vmatpush2.bf16.msra.mxu0 0
    %207 = vmatprep.subr.bf16.mxu0 0
    %208 = vmatpush2.bf16.msra.mxu0 0
    %209 = vmatprep.subr.bf16.mxu0 0
    %210 = vmatpush2.bf16.msra.mxu0 0
    %211 = vmatprep.subr.bf16.mxu0 0
    %212 = vmatpush2.bf16.msra.mxu0 0
    %213 = vmatprep.subr.bf16.mxu0 0
    %214 = vmatpush2.bf16.msra.mxu0 0
    %215 = vmatprep.subr.bf16.mxu0 0
    %216 = vmatpush2.bf16.msra.mxu0 0
    %217 = vmatprep.subr.bf16.mxu0 0
    %218 = vmatpush2.bf16.msra.mxu0 0
    %219 = vmatprep.mubr.bf16.mxu0 0
    %220 = vmatmul.mubr.bf16.gmra.mxu0 %v115
    %v221 = vpop.f32.mrf.mxu0
    %v222 = vadd.f32 %v137, %v221
    %v223 = vpop.f32.mrf.mxu0
    %v224 = vpop.f32.mrf.mxu0
    %v225 = vpop.f32.mrf.mxu0
    %226 = vdwg.mxu0
    %v227 = vmax.f32 %v222, 0.0
    %v228 = vpack.c.bf16 %v227, %v227
    %v229 = vld [vmem:[%s5] sm:$0xf]
    %v230 = vld [vmem:[%s5 + $0x4] sm:$0xf]
    %v231 = vld [vmem:[%s5 + $0x8] sm:$0xf]
    %v232 = vld [vmem:[%s5 + $0xc] sm:$0xf]
    %v233 = vld [vmem:[%s5 + $0x10] sm:$0xf]
    %v234 = vld [vmem:[%s5 + $0x14] sm:$0xf]
    %v235 = vld [vmem:[%s5 + $0x18] sm:$0xf]
    %v236 = vld [vmem:[%s5 + $0x1c] sm:$0xf]
    %v237 = vld [vmem:[%s5 + $0x20] sm:$0xf]
    %v238 = vld [vmem:[%s5 + $0x24] sm:$0xf]
    %v239 = vld [vmem:[%s5 + $0x28] sm:$0xf]
    %v240 = vld [vmem:[%s5 + $0x2c] sm:$0xf]
    %v241 = vld [vmem:[%s5 + $0x30] sm:$0xf]
    %v242 = vld [vmem:[%s5 + $0x34] sm:$0xf]
    %v243 = vld [vmem:[%s5 + $0x38] sm:$0xf]
    %v244 = vld [vmem:[%s5 + $0x3c] sm:$0xf]
    %v245 = vld [vmem:[%s6] sm:$0x1]
    %v247 = vlaneseq
    %v248 = vshrl.u32 %v247, 7
    %v249 = vsub.s32 0, %v248
    %v250 = vrot.slane %v245, %v249
    %v268 = vunpack.c.l.b16 %v229
    %v269 = vunpack.c.l.b16 %v230
    %v270 = vunpack.c.l.b16 %v231
    %v271 = vunpack.c.l.b16 %v232
    %v272 = vunpack.c.l.b16 %v233
    %v273 = vunpack.c.l.b16 %v234
    %v274 = vunpack.c.l.b16 %v235
    %v275 = vunpack.c.l.b16 %v236
    %v276 = vunpack.c.l.b16 %v237
    %v277 = vunpack.c.l.b16 %v238
    %v278 = vunpack.c.l.b16 %v239
    %v279 = vunpack.c.l.b16 %v240
    %v280 = vunpack.c.l.b16 %v241
    %v281 = vunpack.c.l.b16 %v242
    %v282 = vunpack.c.l.b16 %v243
    %v283 = vunpack.c.l.b16 %v244
    %v284 = vpack.c.b16 %v269, %v268
    %v285 = vpack.c.b16 %v271, %v270
    %v286 = vpack.c.b16 %v273, %v272
    %v287 = vpack.c.b16 %v275, %v274
    %v288 = vpack.c.b16 %v277, %v276
    %v289 = vpack.c.b16 %v279, %v278
    %v290 = vpack.c.b16 %v281, %v280
    %v291 = vpack.c.b16 %v283, %v282
    %300 = vmatprep.subr.bf16.mxu0 0
    %301 = vmatpush1.bf16.msra.mxu0 %v291
    %302 = vmatprep.subr.bf16.mxu0 0
    %303 = vmatpush1.bf16.msra.mxu0 %v290
    %304 = vmatprep.subr.bf16.mxu0 0
    %305 = vmatpush1.bf16.msra.mxu0 %v289
    %306 = vmatprep.subr.bf16.mxu0 0
    %307 = vmatpush1.bf16.msra.mxu0 %v288
    %308 = vmatprep.subr.bf16.mxu0 0
    %309 = vmatpush1.bf16.msra.mxu0 %v287
    %310 = vmatprep.subr.bf16.mxu0 0
    %311 = vmatpush1.bf16.msra.mxu0 %v286
    %312 = vmatprep.subr.bf16.mxu0 0
    %313 = vmatpush1.bf16.msra.mxu0 %v285
    %314 = vmatprep.subr.bf16.mxu0 0
    %315 = vmatpush1.bf16.msra.mxu0 %v284
    %316 = vmatprep.subr.bf16.mxu0 0
    %317 = vmatpush2.bf16.msra.mxu0 0
    %318 = vmatprep.subr.bf16.mxu0 0
    %319 = vmatpush2.bf16.msra.mxu0 0
    %320 = vmatprep.subr.bf16.mxu0 0
    %321 = vmatpush2.bf16.msra.mxu0 0
    %322 = vmatprep.subr.bf16.mxu0 0
    %323 = vmatpush2.bf16.msra.mxu0 0
    %324 = vmatprep.subr.bf16.mxu0 0
    %325 = vmatpush2.bf16.msra.mxu0 0
    %326 = vmatprep.subr.bf16.mxu0 0
    %327 = vmatpush2.bf16.msra.mxu0 0
    %328 = vmatprep.subr.bf16.mxu0 0
    %329 = vmatpush2.bf16.msra.mxu0 0
    %330 = vmatprep.subr.bf16.mxu0 0
    %331 = vmatpush2.bf16.msra.mxu0 0
    %332 = vmatprep.mubr.bf16.mxu0 0
    %333 = vmatmul.mubr.bf16.gmra.mxu0 %v228
    %v334 = vpop.f32.mrf.mxu0
    %v335 = vadd.f32 %v250, %v334
    %v336 = vpop.f32.mrf.mxu0
    %v337 = vpop.f32.mrf.mxu0
    %v338 = vpop.f32.mrf.mxu0
    %339 = vdwg.mxu0
    %vm340 = vcmask 31744
    %341 = vst.msk [vmem:[%s7] sm:$0xff] %vm340, %v335
    // Predicated region
    $region38: #{tpu_custom_call.1} parent=1 // pred_check
      _
    $region39: #{tpu_custom_call.1} parent=1 // pred_check_branch
      %343 = sbr.rel (0) target = $region41
    $region40: #{tpu_custom_call.1} parent=1 // pred_region
      _
    $region41: #{tpu_custom_call.1} parent=1 // pred_fallthru
      _
    // Predicated region
    $region42: #{tpu_custom_call.1} parent=1 // pred_check
      _
    $region43: #{tpu_custom_call.1} parent=1 // pred_check_branch
      %345 = sbr.rel (0) target = $region45
    $region44: #{tpu_custom_call.1} parent=1 // pred_region
      _
    $region45: #{tpu_custom_call.1} parent=1 // pred_fallthru
      _
    %346 = vsyncpa [#allocation3], 1
    %347 = vsyncpa [#allocation5], 1

</llo_original>
